<compile_context>
chip_gen: v7x
topology: tpu7x:2x2x1
jax: 0.10.0
libtpu: 0.0.40
codegen_flags: <defaults>
</compile_context>

<pallas_src>
from typing import List

import numpy as np
import jax
import jax.numpy as jnp
from jax.experimental import pallas as pl
from jax.experimental.pallas import tpu as pltpu


# bf16 matmul operands with f32 MXU accumulation.  Set to None for pure-f32
# matmuls (preferable on v5e when N*d is tiny and matmuls are latency-bound).
MATMUL_DTYPE = jnp.bfloat16


# ----------------------------------------------------------------------------
# Fused Pallas kernel (whole forward per graph; batch handled by the grid)
# ----------------------------------------------------------------------------

def _make_fused_kernel(num_layers: int, n_real: int, n_pad: int, mm_dtype):
    """Fused forward kernel for a fixed layer count / node count."""

    def mm(a, b):
        if mm_dtype is not None:
            a = a.astype(mm_dtype)   # no-op if already pre-cast
            b = b.astype(mm_dtype)
        return jnp.dot(a, b, preferred_element_type=jnp.float32)

    def kernel(*refs):
        # refs: frames, pool, (w_i, b_i)*num_layers, fc_w, fc_b, sc_w, sc_b, out
        frames_ref, pool_ref = refs[0], refs[1]
        o_ref = refs[-1]
        p = 2

        x0 = frames_ref[...]                 # (n_pad, d0) residual input
        x = x0

        # Hoisted chain-adjacency masks / inverse degrees (computed once,
        # reused by every layer; JAX does not CSE broadcast_in_dim).
        row = jax.lax.broadcasted_iota(jnp.int32, (n_pad, 1), 0)
        left_mask = (row > 0).astype(jnp.float32)             # has prev neighbor
        right_mask = (row < n_real - 1).astype(jnp.float32)   # has next neighbor
        inv_deg = 1.0 / (1.0 + left_mask + right_mask)

        # TODO(synk): GraphConvolutionLayer internals were not provided;
        # assumed Kipf-style GCN: relu(adj @ (x @ W) + b) with a row-normalized
        # bidirectional-chain adjacency (self loop + prev + next).
        for _ in range(num_layers):
            w_ref, b_ref = refs[p], refs[p + 1]
            p += 2
            support = mm(x, w_ref[...])                         # MXU
            # Tridiagonal adjacency via XLU sublane rolls (shifts must be >= 0;
            # shift = n_pad - 1 is the wrap-around equivalent of shift -1).
            prev = pltpu.roll(support, shift=1, axis=0)         # prev[i] = s[i-1]
            nxt = pltpu.roll(support, shift=n_pad - 1, axis=0)  # nxt[i]  = s[i+1]
            agg = (support + prev * left_mask + nxt * right_mask) * inv_deg
            x = jnp.maximum(agg + b_ref[...], 0.0)

        fc_w_ref, fc_b_ref = refs[p], refs[p + 1]
        sc_w_ref, sc_b_ref = refs[p + 2], refs[p + 3]

        # residual: frames += fc(frames_original)
        x = x + mm(x0, fc_w_ref[...]) + fc_b_ref[...]

        # segment mean pooling: (S, n_pad) @ (n_pad, d_last) on the MXU.
        feats = mm(pool_ref[...], x)

        # scorer (d_last -> 1): VPU multiply + lane reduction (no width-1 matmul).
        # Output stays a (S, 1) column; at large S make it lane-dense instead.
        scores = jnp.sum(feats * sc_w_ref[...], axis=-1, keepdims=True)
        o_ref[...] = scores + sc_b_ref[...]

    return kernel


def _estimate_vmem_bytes(args, gcn_dims, n_pad, num_seg):
    # Double-buffered per-graph blocks + resident params + activation temps.
    per_graph = (args[0].dtype.itemsize * n_pad * gcn_dims[0]
                 + args[1].dtype.itemsize * num_seg * n_pad
                 + 4 * num_seg)
    params_bytes = sum(int(np.prod(a.shape)) * a.dtype.itemsize for a in args[2:])
    acts = 6 * n_pad * max(gcn_dims) * 4
    needed = 2 * per_graph + 2 * params_bytes + acts
    # Explicit scoped-VMEM budget (v7x: 64 MiB physical, 32 MiB scoped default).
    return int(min(max(2 * needed, 16 << 20), 48 << 20))


def build_forward(gcn_dims: List[int], n_real: int, n_pad: int, num_seg: int,
                  mm_dtype=MATMUL_DTYPE):
    num_layers = len(gcn_dims) - 1
    kernel = _make_fused_kernel(num_layers, n_real, n_pad, mm_dtype)

    def _replicated_spec(arr):
        # Same (full) block every grid step -> stays VMEM-resident across graphs.
        return pl.BlockSpec(arr.shape, lambda b, nd=arr.ndim: (0,) * nd)

    @jax.jit
    def forward(params, frames_padded, pool_mats):
        B = frames_padded.shape[0]
        d0 = frames_padded.shape[-1]

        args = [frames_padded, pool_mats]
        for w, b in params["gcns"]:
            args.extend((w, b))
        args.extend(params["fc"])
        args.extend(params["scorer"])

        in_specs = [
            pl.BlockSpec((None, n_pad, d0), lambda b: (b, 0, 0)),       # frames
            pl.BlockSpec((None, num_seg, n_pad), lambda b: (b, 0, 0)),  # pool
        ] + [_replicated_spec(a) for a in args[2:]]

        scores = pl.pallas_call(
            kernel,
            grid=(B,),
            out_shape=jax.ShapeDtypeStruct((B, num_seg, 1), jnp.float32),
            in_specs=in_specs,
            out_specs=pl.BlockSpec((None, num_seg, 1), lambda b: (b, 0, 0)),
            compiler_params=pltpu.CompilerParams(
                dimension_semantics=("parallel",),
                vmem_limit_bytes=_estimate_vmem_bytes(args, gcn_dims,
                                                      n_pad, num_seg)),
        )(*args)
        return scores.reshape(B, num_seg)

    return forward


# ----------------------------------------------------------------------------
# Host-side setup (runs once, hoisted out of the per-call path)
# ----------------------------------------------------------------------------

def pad_nodes(frames: jnp.ndarray, multiple: int = 8):
    n = frames.shape[-2]
    n_pad = -(-n // multiple) * multiple
    if n_pad != n:
        pad = [(0, 0)] * frames.ndim
        pad[-2] = (0, n_pad - n)
        frames = jnp.pad(frames, pad)
    return frames, n_pad


def segments_to_pool_matrix(segment_indices, n_pad: int) -> jnp.ndarray:
    # P[s, i] = (#occurrences of node i in segment s) / len(segment s), so that
    # P @ frames == stack([mean(frames[idx], axis=0) for idx in segments]).
    # Padded columns are zero by construction (required invariant).
    # TODO(synk): for very large N, replace this dense O(S*N) matrix with
    # scalar-prefetched segment offsets + in-kernel segment sums.
    rows = []
    for idx in segment_indices:
        idx = np.asarray(idx, dtype=np.int64)
        row = np.zeros((n_pad,), dtype=np.float32)
        np.add.at(row, idx, 1.0)
        row /= float(len(idx))
        rows.append(row)
    return jnp.asarray(np.stack(rows, axis=0))


def _linear_params(key, in_dim, out_dim):
    # PyTorch nn.Linear default init: U(-k, k), k = 1/sqrt(in_dim).
    kw, kb = jax.random.split(key)
    k = 1.0 / np.sqrt(in_dim)
    w = jax.random.uniform(kw, (in_dim, out_dim), jnp.float32, -k, k)  # (in, out)
    b = jax.random.uniform(kb, (1, out_dim), jnp.float32, -k, k)       # pre-reshaped
    return w, b


def init_params(key, gcn_dims: List[int]):
    keys = jax.random.split(key, len(gcn_dims) + 1)
    gcn_params = []
    for i, (din, dout) in enumerate(zip(gcn_dims[:-1], gcn_dims[1:])):
        gcn_params.append(_linear_params(keys[i], din, dout))
    fc_w, fc_b = _linear_params(keys[-2], gcn_dims[0], gcn_dims[-1])
    sc_w, sc_b = _linear_params(keys[-1], gcn_dims[-1], 1)
    # scorer weight stored lane-major (1, d_last) for the in-kernel lane reduce.
    return {"gcns": gcn_params, "fc": (fc_w, fc_b),
            "scorer": (sc_w.reshape(1, -1), sc_b.reshape(1, 1))}


def prepare_params(params, mm_dtype):
    """One-time param transform: pre-cast matmul weights to the MXU dtype."""
    if mm_dtype is None:
        return params
    cast = lambda w: w.astype(mm_dtype)
    return {
        "gcns": [(cast(w), b) for w, b in params["gcns"]],
        "fc": (cast(params["fc"][0]), params["fc"][1]),
        "scorer": params["scorer"],   # used on the VPU lane reduce -> keep f32
    }


# ----------------------------------------------------------------------------
# Pure-JAX reference (dense adjacency) for a numerical sanity check
# ----------------------------------------------------------------------------

def reference_forward(params, frames, segment_indices):
    n = frames.shape[0]
    # TODO(synk): bidirectional_graph() was not provided in the source repo;
    # assumed bidirectional chain adjacency with self-loops, row-normalized.
    a = (np.eye(n) + np.eye(n, k=1) + np.eye(n, k=-1)).astype(np.float32)
    adj = jnp.asarray(a / a.sum(axis=1, keepdims=True))
    x0 = frames
    x = frames
    for w, b in params["gcns"]:
        x = jnp.maximum(adj @ (x.astype(jnp.float32) @ w.astype(jnp.float32)) + b, 0.0)
    fc_w, fc_b = params["fc"]
    x = x + x0 @ fc_w.astype(jnp.float32) + fc_b
    sc_w, sc_b = params["scorer"]
    feats = jnp.stack([jnp.mean(x[np.asarray(i)], axis=0) for i in segment_indices])
    return (jnp.sum(feats * sc_w, axis=-1, keepdims=True) + sc_b).reshape(-1)


if __name__ == "__main__":
    gcn_dims = [32, 64, 16]
    N = 8           # nodes per graph
    B = 2           # graphs per call (amortizes dispatch; engages v7x's 2 TCs)
    NUM_SEG = 3

    key = jax.random.PRNGKey(0)
    k_param, k_frames = jax.random.split(key)
    params = init_params(k_param, gcn_dims)
    frames = jax.random.normal(k_frames, (B, N, gcn_dims[0]), jnp.float32)

    segment_indices = [
        [np.array([0, 1, 2]), np.array([3, 4]), np.array([5, 6, 7])],
        [np.array([0, 1]), np.array([2, 3, 4, 5]), np.array([6, 7])],
    ]

    # One-time host-side setup (hoisted out of the per-call path).
    frames_padded, n_pad = pad_nodes(frames, multiple=8)
    pool_mats = jnp.stack(
        [segments_to_pool_matrix(s, n_pad) for s in segment_indices])
    if MATMUL_DTYPE is not None:
        pool_mats = pool_mats.astype(MATMUL_DTYPE)
    run_params = prepare_params(params, MATMUL_DTYPE)

    forward = build_forward(gcn_dims, n_real=N, n_pad=n_pad, num_seg=NUM_SEG,
                            mm_dtype=MATMUL_DTYPE)

    scores = forward(run_params, frames_padded, pool_mats)
    jax.block_until_ready(scores)
    assert scores.shape == (B, NUM_SEG)

    for b in range(B):
        ref = reference_forward(params, frames[b], segment_indices[b])
        np.testing.assert_allclose(np.asarray(scores[b]), np.asarray(ref),
                                   rtol=5e-2, atol=5e-2)
    print("KERNEL_OK")
</pallas_src>

<mosaic_0001>
module attributes {stable_mosaic.version = 11 : i64} {
  func.func @kernel(%arg0: i32, %arg1: memref<1x8x32xf32, #tpu.memory_space<vmem>>, %arg2: memref<1x3x8xbf16, #tpu.memory_space<vmem>>, %arg3: memref<32x64xbf16, #tpu.memory_space<vmem>>, %arg4: memref<1x64xf32, #tpu.memory_space<vmem>>, %arg5: memref<64x16xbf16, #tpu.memory_space<vmem>>, %arg6: memref<1x16xf32, #tpu.memory_space<vmem>>, %arg7: memref<32x16xbf16, #tpu.memory_space<vmem>>, %arg8: memref<1x16xf32, #tpu.memory_space<vmem>>, %arg9: memref<1x16xf32, #tpu.memory_space<vmem>>, %arg10: memref<1x1xf32, #tpu.memory_space<vmem>>, %arg11: memref<1x3x1xf32, #tpu.memory_space<vmem>>) attributes {dimension_semantics = [#tpu.dimension_semantics<parallel>], iteration_bounds = array<i64: 2>, scalar_prefetch = 0 : i64, scratch_operands = 0 : i64, tpu.core_type = #tpu.core_type<tc>, window_params = [{transform_indices = @transform_0, window_bounds = array<i64: 1, 8, 32>}, {transform_indices = @transform_1, window_bounds = array<i64: 1, 3, 8>}, {pipeline_mode = #tpu.pipeline_mode<synchronous>, transform_indices = @transform_2, window_bounds = array<i64: 32, 64>}, {pipeline_mode = #tpu.pipeline_mode<synchronous>, transform_indices = @transform_3, window_bounds = array<i64: 1, 64>}, {pipeline_mode = #tpu.pipeline_mode<synchronous>, transform_indices = @transform_4, window_bounds = array<i64: 64, 16>}, {pipeline_mode = #tpu.pipeline_mode<synchronous>, transform_indices = @transform_5, window_bounds = array<i64: 1, 16>}, {pipeline_mode = #tpu.pipeline_mode<synchronous>, transform_indices = @transform_6, window_bounds = array<i64: 32, 16>}, {pipeline_mode = #tpu.pipeline_mode<synchronous>, transform_indices = @transform_7, window_bounds = array<i64: 1, 16>}, {pipeline_mode = #tpu.pipeline_mode<synchronous>, transform_indices = @transform_8, window_bounds = array<i64: 1, 16>}, {pipeline_mode = #tpu.pipeline_mode<synchronous>, transform_indices = @transform_9, window_bounds = array<i64: 1, 1>}, {transform_indices = @transform_10, window_bounds = array<i64: 1, 3, 1>}]} {
    %c0 = arith.constant 0 : index
    %c0_0 = arith.constant 0 : index
    %c0_1 = arith.constant 0 : index
    %0 = vector.load %arg1[%c0, %c0_0, %c0_1] : memref<1x8x32xf32, #tpu.memory_space<vmem>>, vector<1x8x32xf32>
    %1 = vector.shape_cast %0 : vector<1x8x32xf32> to vector<8x32xf32>
    %2 = tpu.iota {dimensions = array<i32: 0>} : vector<8x1xi32>
    %c0_i32 = arith.constant 0 : i32
    %3 = vector.broadcast %c0_i32 : i32 to vector<8x1xi32>
    %4 = arith.cmpi sgt, %2, %3 : vector<8x1xi32>
    %5 = arith.extui %4 : vector<8x1xi1> to vector<8x1xi32>
    %6 = arith.sitofp %5 : vector<8x1xi32> to vector<8x1xf32>
    %c7_i32 = arith.constant 7 : i32
    %7 = vector.broadcast %c7_i32 : i32 to vector<8x1xi32>
    %8 = arith.cmpi slt, %2, %7 : vector<8x1xi32>
    %9 = arith.extui %8 : vector<8x1xi1> to vector<8x1xi32>
    %10 = arith.sitofp %9 : vector<8x1xi32> to vector<8x1xf32>
    %cst = arith.constant 1.000000e+00 : f32
    %11 = vector.broadcast %cst : f32 to vector<8x1xf32>
    %12 = arith.addf %11, %6 : vector<8x1xf32>
    %13 = arith.addf %12, %10 : vector<8x1xf32>
    %cst_2 = arith.constant 1.000000e+00 : f32
    %14 = vector.broadcast %cst_2 : f32 to vector<8x1xf32>
    %15 = arith.divf %14, %13 : vector<8x1xf32>
    %c0_3 = arith.constant 0 : index
    %c0_4 = arith.constant 0 : index
    %16 = vector.load %arg3[%c0_3, %c0_4] : memref<32x64xbf16, #tpu.memory_space<vmem>>, vector<32x64xbf16>
    %17 = arith.truncf %1 : vector<8x32xf32> to vector<8x32xbf16>
    %cst_5 = arith.constant dense<0.000000e+00> : vector<8x64xf32>
    %18 = tpu.matmul %17, %16, %cst_5 {dimension_numbers = #tpu.dot_dimension_numbers<[1], [0], [0], [1], [0, 0, 1, 1], [], []>} : vector<8x32xbf16>, vector<32x64xbf16>, vector<8x64xf32> -> vector<8x64xf32>
    %c1_i32 = arith.constant 1 : i32
    %19 = tpu.dynamic_rotate %18 by %c1_i32 dim 0 : vector<8x64xf32>, i32 -> vector<8x64xf32>
    %c7_i32_6 = arith.constant 7 : i32
    %20 = tpu.dynamic_rotate %18 by %c7_i32_6 dim 0 : vector<8x64xf32>, i32 -> vector<8x64xf32>
    %21 = vector.broadcast %6 : vector<8x1xf32> to vector<8x64xf32>
    %22 = arith.mulf %19, %21 : vector<8x64xf32>
    %23 = arith.addf %18, %22 : vector<8x64xf32>
    %24 = vector.broadcast %10 : vector<8x1xf32> to vector<8x64xf32>
    %25 = arith.mulf %20, %24 : vector<8x64xf32>
    %26 = arith.addf %23, %25 : vector<8x64xf32>
    %27 = vector.broadcast %15 : vector<8x1xf32> to vector<8x64xf32>
    %28 = arith.mulf %26, %27 : vector<8x64xf32>
    %c0_7 = arith.constant 0 : index
    %c0_8 = arith.constant 0 : index
    %29 = vector.load %arg4[%c0_7, %c0_8] : memref<1x64xf32, #tpu.memory_space<vmem>>, vector<1x64xf32>
    %30 = vector.broadcast %29 : vector<1x64xf32> to vector<8x64xf32>
    %31 = arith.addf %28, %30 : vector<8x64xf32>
    %cst_9 = arith.constant 0.000000e+00 : f32
    %32 = vector.broadcast %cst_9 : f32 to vector<8x64xf32>
    %33 = arith.maximumf %31, %32 : vector<8x64xf32>
    %c0_10 = arith.constant 0 : index
    %c0_11 = arith.constant 0 : index
    %34 = vector.load %arg5[%c0_10, %c0_11] : memref<64x16xbf16, #tpu.memory_space<vmem>>, vector<64x16xbf16>
    %35 = arith.truncf %33 : vector<8x64xf32> to vector<8x64xbf16>
    %cst_12 = arith.constant dense<0.000000e+00> : vector<8x16xf32>
    %36 = tpu.matmul %35, %34, %cst_12 {dimension_numbers = #tpu.dot_dimension_numbers<[1], [0], [0], [1], [0, 0, 1, 1], [], []>} : vector<8x64xbf16>, vector<64x16xbf16>, vector<8x16xf32> -> vector<8x16xf32>
    %c1_i32_13 = arith.constant 1 : i32
    %37 = tpu.dynamic_rotate %36 by %c1_i32_13 dim 0 : vector<8x16xf32>, i32 -> vector<8x16xf32>
    %c7_i32_14 = arith.constant 7 : i32
    %38 = tpu.dynamic_rotate %36 by %c7_i32_14 dim 0 : vector<8x16xf32>, i32 -> vector<8x16xf32>
    %39 = vector.broadcast %6 : vector<8x1xf32> to vector<8x16xf32>
    %40 = arith.mulf %37, %39 : vector<8x16xf32>
    %41 = arith.addf %36, %40 : vector<8x16xf32>
    %42 = vector.broadcast %10 : vector<8x1xf32> to vector<8x16xf32>
    %43 = arith.mulf %38, %42 : vector<8x16xf32>
    %44 = arith.addf %41, %43 : vector<8x16xf32>
    %45 = vector.broadcast %15 : vector<8x1xf32> to vector<8x16xf32>
    %46 = arith.mulf %44, %45 : vector<8x16xf32>
    %c0_15 = arith.constant 0 : index
    %c0_16 = arith.constant 0 : index
    %47 = vector.load %arg6[%c0_15, %c0_16] : memref<1x16xf32, #tpu.memory_space<vmem>>, vector<1x16xf32>
    %48 = vector.broadcast %47 : vector<1x16xf32> to vector<8x16xf32>
    %49 = arith.addf %46, %48 : vector<8x16xf32>
    %cst_17 = arith.constant 0.000000e+00 : f32
    %50 = vector.broadcast %cst_17 : f32 to vector<8x16xf32>
    %51 = arith.maximumf %49, %50 : vector<8x16xf32>
    %c0_18 = arith.constant 0 : index
    %c0_19 = arith.constant 0 : index
    %52 = vector.load %arg7[%c0_18, %c0_19] : memref<32x16xbf16, #tpu.memory_space<vmem>>, vector<32x16xbf16>
    %53 = arith.truncf %1 : vector<8x32xf32> to vector<8x32xbf16>
    %cst_20 = arith.constant dense<0.000000e+00> : vector<8x16xf32>
    %54 = tpu.matmul %53, %52, %cst_20 {dimension_numbers = #tpu.dot_dimension_numbers<[1], [0], [0], [1], [0, 0, 1, 1], [], []>} : vector<8x32xbf16>, vector<32x16xbf16>, vector<8x16xf32> -> vector<8x16xf32>
    %55 = arith.addf %51, %54 : vector<8x16xf32>
    %c0_21 = arith.constant 0 : index
    %c0_22 = arith.constant 0 : index
    %56 = vector.load %arg8[%c0_21, %c0_22] : memref<1x16xf32, #tpu.memory_space<vmem>>, vector<1x16xf32>
    %57 = vector.broadcast %56 : vector<1x16xf32> to vector<8x16xf32>
    %58 = arith.addf %55, %57 : vector<8x16xf32>
    %c0_23 = arith.constant 0 : index
    %c0_24 = arith.constant 0 : index
    %c0_25 = arith.constant 0 : index
    %59 = vector.load %arg2[%c0_23, %c0_24, %c0_25] : memref<1x3x8xbf16, #tpu.memory_space<vmem>>, vector<1x3x8xbf16>
    %60 = vector.shape_cast %59 : vector<1x3x8xbf16> to vector<3x8xbf16>
    %61 = arith.truncf %58 : vector<8x16xf32> to vector<8x16xbf16>
    %cst_26 = arith.constant dense<0.000000e+00> : vector<3x16xf32>
    %62 = tpu.matmul %60, %61, %cst_26 {dimension_numbers = #tpu.dot_dimension_numbers<[1], [0], [0], [1], [0, 0, 1, 1], [], []>} : vector<3x8xbf16>, vector<8x16xbf16>, vector<3x16xf32> -> vector<3x16xf32>
    %c0_27 = arith.constant 0 : index
    %c0_28 = arith.constant 0 : index
    %63 = vector.load %arg9[%c0_27, %c0_28] : memref<1x16xf32, #tpu.memory_space<vmem>>, vector<1x16xf32>
    %64 = vector.broadcast %63 : vector<1x16xf32> to vector<3x16xf32>
    %65 = arith.mulf %62, %64 : vector<3x16xf32>
    %cst_29 = arith.constant dense<0.000000e+00> : vector<3xf32>
    %66 = vector.multi_reduction <add>, %65, %cst_29 [1] : vector<3x16xf32> to vector<3xf32>
    %67 = vector.shape_cast %66 : vector<3xf32> to vector<3x1xf32>
    %c0_30 = arith.constant 0 : index
    %c0_31 = arith.constant 0 : index
    %68 = vector.load %arg10[%c0_30, %c0_31] : memref<1x1xf32, #tpu.memory_space<vmem>>, vector<1x1xf32>
    %69 = vector.broadcast %68 : vector<1x1xf32> to vector<3x1xf32>
    %70 = arith.addf %67, %69 : vector<3x1xf32>
    %c0_32 = arith.constant 0 : index
    %c0_33 = arith.constant 0 : index
    %c0_34 = arith.constant 0 : index
    %71 = vector.load %arg11[%c0_32, %c0_33, %c0_34] : memref<1x3x1xf32, #tpu.memory_space<vmem>>, vector<1x3x1xf32>
    %72 = vector.shape_cast %71 : vector<1x3x1xf32> to vector<3x1xf32>
    %73 = vector.shape_cast %70 : vector<3x1xf32> to vector<1x3x1xf32>
    tpu.vector_store %arg11[%c0_32, %c0_33, %c0_34], %73 {strides = array<i32>} : memref<1x3x1xf32, #tpu.memory_space<vmem>>, vector<1x3x1xf32>,
    return
  }
  func.func @transform_0(%arg0: i32) -> (i32, i32, i32) {
    %c0_i32 = arith.constant 0 : i32
    %c0_i32_0 = arith.constant 0 : i32
    %c0_i32_1 = arith.constant 0 : i32
    return %arg0, %c0_i32, %c0_i32_0 : i32, i32, i32
  }
  func.func @transform_1(%arg0: i32) -> (i32, i32, i32) {
    %c0_i32 = arith.constant 0 : i32
    %c0_i32_0 = arith.constant 0 : i32
    %c0_i32_1 = arith.constant 0 : i32
    return %arg0, %c0_i32, %c0_i32_0 : i32, i32, i32
  }
  func.func @transform_2(%arg0: i32) -> (i32, i32) {
    %c0_i32 = arith.constant 0 : i32
    %c0_i32_0 = arith.constant 0 : i32
    %c0_i32_1 = arith.constant 0 : i32
    return %c0_i32, %c0_i32_0 : i32, i32
  }
  func.func @transform_3(%arg0: i32) -> (i32, i32) {
    %c0_i32 = arith.constant 0 : i32
    %c0_i32_0 = arith.constant 0 : i32
    %c0_i32_1 = arith.constant 0 : i32
    return %c0_i32, %c0_i32_0 : i32, i32
  }
  func.func @transform_4(%arg0: i32) -> (i32, i32) {
    %c0_i32 = arith.constant 0 : i32
    %c0_i32_0 = arith.constant 0 : i32
    %c0_i32_1 = arith.constant 0 : i32
    return %c0_i32, %c0_i32_0 : i32, i32
  }
  func.func @transform_5(%arg0: i32) -> (i32, i32) {
    %c0_i32 = arith.constant 0 : i32
    %c0_i32_0 = arith.constant 0 : i32
    %c0_i32_1 = arith.constant 0 : i32
    return %c0_i32, %c0_i32_0 : i32, i32
  }
  func.func @transform_6(%arg0: i32) -> (i32, i32) {
    %c0_i32 = arith.constant 0 : i32
    %c0_i32_0 = arith.constant 0 : i32
    %c0_i32_1 = arith.constant 0 : i32
    return %c0_i32, %c0_i32_0 : i32, i32
  }
  func.func @transform_7(%arg0: i32) -> (i32, i32) {
    %c0_i32 = arith.constant 0 : i32
    %c0_i32_0 = arith.constant 0 : i32
    %c0_i32_1 = arith.constant 0 : i32
    return %c0_i32, %c0_i32_0 : i32, i32
  }
  func.func @transform_8(%arg0: i32) -> (i32, i32) {
    %c0_i32 = arith.constant 0 : i32
    %c0_i32_0 = arith.constant 0 : i32
    %c0_i32_1 = arith.constant 0 : i32
    return %c0_i32, %c0_i32_0 : i32, i32
  }
  func.func @transform_9(%arg0: i32) -> (i32, i32) {
    %c0_i32 = arith.constant 0 : i32
    %c0_i32_0 = arith.constant 0 : i32
    %c0_i32_1 = arith.constant 0 : i32
    return %c0_i32, %c0_i32_0 : i32, i32
  }
  func.func @transform_10(%arg0: i32) -> (i32, i32, i32) {
    %c0_i32 = arith.constant 0 : i32
    %c0_i32_0 = arith.constant 0 : i32
    %c0_i32_1 = arith.constant 0 : i32
    return %arg0, %c0_i32, %c0_i32_0 : i32, i32, i32
  }
}

</mosaic_0001>

<llo_original>
// kernel: forward.1
$region0: #{forward.1}
  #allocation0 [shape = 'u32[]', space=smem, size = 0x4, offset = 0x4, fixed_abs, tag = 'smem constant byte address 0x4 - core index']
  #allocation1 [shape = 'u32[144,128]{1,0:T(1,128)}', space=vmem, size = 0x12000, scoped, tag = 'internal scratch']
  #allocation2 [shape = 'f32[1,1]{1,0:T(1,128)S(1)}', space=vmem, size = 0x200, scoped, tag = 'scoped memory for forward.1']
  %s0 = inlined_call_operand.vmem [shape: f32[2,8,32], index: 0, kind: input, shape index: {}]
  %s1 = inlined_call_operand.vmem [shape: bf16[2,3,8], index: 1, kind: input, shape index: {}]
  %s2 = inlined_call_operand.vmem [shape: bf16[32,64], index: 2, kind: input, shape index: {}]
  %s3 = inlined_call_operand.vmem [shape: f32[1,64], index: 3, kind: input, shape index: {}]
  %s4 = inlined_call_operand.vmem [shape: bf16[64,16], index: 4, kind: input, shape index: {}]
  %s5 = inlined_call_operand.vmem [shape: f32[1,16], index: 5, kind: input, shape index: {}]
  %s6 = inlined_call_operand.vmem [shape: bf16[32,16], index: 6, kind: input, shape index: {}]
  %s7 = inlined_call_operand.vmem [shape: f32[1,16], index: 7, kind: input, shape index: {}]
  %s8 = inlined_call_operand.vmem [shape: f32[1,16], index: 8, kind: input, shape index: {}]
  %s9 = inlined_call_operand.<no memory space> [shape: f32[1,1], index: 9, kind: input, shape index: {}]
  %s10 = inlined_call_operand.vmem [shape: f32[2,3,1], index: 10, kind: output, shape index: {}]
  %s11 = sld [smem:[#allocation0]]
  $region73: #{forward.1} parent=0
    _
  %s13 = ssub.s32 1, %s11
  %s14 = scalar_select 0, %s13, %s11
  %v15 = vstv %s9
  %16 = vst [vmem:[#allocation2] sm:$0x1] %v15
  loop: start=0, step=1, limit=4
  $region2: #{forward.1} parent=0 // loop_pre_header
    _
  $region3: #{forward.1} parent=0 // loop_header
    %s18 = sphi 0, %s22
    %p19 = scmp.ge.s32.totalorder %s18, 4
    %s28 = sphi 0, %s30
    %s31 = sphi 0, %s28
    %s32 = sphi 0, %s31
    %s48 = sphi 0, %s32
    %s54 = sphi 0, %s56
    %s57 = sphi 0, %s54
    %s58 = sphi 0, %s57
    %s74 = sphi 0, %s58
    %s78 = sphi 0, %s78
    %s80 = sphi 0, %s78
    %s81 = sphi 0, %s80
    %s95 = sphi 0, %s81
    %s99 = sphi 0, %s99
    %s101 = sphi 0, %s99
    %s102 = sphi 0, %s101
    %s116 = sphi 0, %s102
    %s120 = sphi 0, %s120
    %s122 = sphi 0, %s120
    %s123 = sphi 0, %s122
    %s137 = sphi 0, %s123
    %s141 = sphi 0, %s141
    %s143 = sphi 0, %s141
    %s144 = sphi 0, %s143
    %s158 = sphi 0, %s144
    %s162 = sphi 0, %s162
    %s164 = sphi 0, %s162
    %s165 = sphi 0, %s164
    %s179 = sphi 0, %s165
    %s183 = sphi 0, %s183
    %s185 = sphi 0, %s183
    %s186 = sphi 0, %s185
    %s200 = sphi 0, %s186
    %s204 = sphi 0, %s204
    %s206 = sphi 0, %s204
    %s207 = sphi 0, %s206
    %s221 = sphi 0, %s207
    %s225 = sphi 0, %s225
    %s227 = sphi 0, %s225
    %s228 = sphi 0, %s227
    %s242 = sphi 0, %s228
    %s248 = sphi 0, %s250
    %s251 = sphi 0, %s248
    %s252 = sphi 0, %s251
    %s268 = sphi 0, %s252
  $region4: #{forward.1} parent=0 // loop_header_branch
    %21 = sbr.rel (%p19) target = $region8
  $region5: #{forward.1} parent=0 // loop_body
    %s23 = ssub.s32 %s18, 1
    %s24 = ssub.s32 %s18, 2
    %s25 = sadd.s32 %s18, 1
    %s26 = ssub.s32 %s18, %s25
    %p27 = scmp.eq.s32.totalorder %s26, 0
    %s29 = sadd.s32 %s28, 1
    %s30 = scalar_select %p27, %s28, %s29
    %p33 = pneg %p27
    %p34 = scmp.eq.s32.totalorder %s18, 1
    %p35 = por %p33, %p34
    %p36 = scmp.ne.s32.totalorder %s28, %s31
    %p37 = scmp.eq.s32.totalorder %s18, 0
    %p38 = por %p36, %p37
    %p39 = scmp.ne.s32.totalorder %s28, %s31
    %p40 = scmp.eq.s32.totalorder %s23, 1
    %p41 = por %p39, %p40
    %p42 = scmp.ne.s32.totalorder %s31, %s32
    %p43 = scmp.eq.s32.totalorder %s23, 0
    %p44 = por %p42, %p43
    %p45 = scmp.ne.s32.totalorder %s31, %s32
    %p46 = scmp.eq.s32.totalorder %s24, 1
    %p47 = por %p45, %p46
    %p49 = scmp.ne.s32.totalorder %s32, %s48
    %p50 = scmp.eq.s32.totalorder %s24, 0
    %p51 = por %p49, %p50
    %s52 = ssub.s32 %s18, %s25
    %p53 = scmp.eq.s32.totalorder %s52, 0
    %s55 = sadd.s32 %s54, 1
    %s56 = scalar_select %p53, %s54, %s55
    %p59 = pneg %p53
    %p60 = scmp.eq.s32.totalorder %s18, 1
    %p61 = por %p59, %p60
    %p62 = scmp.ne.s32.totalorder %s54, %s57
    %p63 = scmp.eq.s32.totalorder %s18, 0
    %p64 = por %p62, %p63
    %p65 = scmp.ne.s32.totalorder %s54, %s57
    %p66 = scmp.eq.s32.totalorder %s23, 1
    %p67 = por %p65, %p66
    %p68 = scmp.ne.s32.totalorder %s57, %s58
    %p69 = scmp.eq.s32.totalorder %s23, 0
    %p70 = por %p68, %p69
    %p71 = scmp.ne.s32.totalorder %s57, %s58
    %p72 = scmp.eq.s32.totalorder %s24, 1
    %p73 = por %p71, %p72
    %p75 = scmp.ne.s32.totalorder %s58, %s74
    %p76 = scmp.eq.s32.totalorder %s24, 0
    %p77 = por %p75, %p76
    %s79 = sadd.s32 %s78, 1
    %p82 = scmp.eq.s32.totalorder %s18, 1
    %p83 = scmp.ne.s32.totalorder %s78, %s80
    %p84 = scmp.eq.s32.totalorder %s18, 0
    %p85 = por %p83, %p84
    %p86 = scmp.ne.s32.totalorder %s78, %s80
    %p87 = scmp.eq.s32.totalorder %s23, 1
    %p88 = por %p86, %p87
    %p89 = scmp.ne.s32.totalorder %s80, %s81
    %p90 = scmp.eq.s32.totalorder %s23, 0
    %p91 = por %p89, %p90
    %p92 = scmp.ne.s32.totalorder %s80, %s81
    %p93 = scmp.eq.s32.totalorder %s24, 1
    %p94 = por %p92, %p93
    %p96 = scmp.ne.s32.totalorder %s81, %s95
    %p97 = scmp.eq.s32.totalorder %s24, 0
    %p98 = por %p96, %p97
    %s100 = sadd.s32 %s99, 1
    %p103 = scmp.eq.s32.totalorder %s18, 1
    %p104 = scmp.ne.s32.totalorder %s99, %s101
    %p105 = scmp.eq.s32.totalorder %s18, 0
    %p106 = por %p104, %p105
    %p107 = scmp.ne.s32.totalorder %s99, %s101
    %p108 = scmp.eq.s32.totalorder %s23, 1
    %p109 = por %p107, %p108
    %p110 = scmp.ne.s32.totalorder %s101, %s102
    %p111 = scmp.eq.s32.totalorder %s23, 0
    %p112 = por %p110, %p111
    %p113 = scmp.ne.s32.totalorder %s101, %s102
    %p114 = scmp.eq.s32.totalorder %s24, 1
    %p115 = por %p113, %p114
    %p117 = scmp.ne.s32.totalorder %s102, %s116
    %p118 = scmp.eq.s32.totalorder %s24, 0
    %p119 = por %p117, %p118
    %s121 = sadd.s32 %s120, 1
    %p124 = scmp.eq.s32.totalorder %s18, 1
    %p125 = scmp.ne.s32.totalorder %s120, %s122
    %p126 = scmp.eq.s32.totalorder %s18, 0
    %p127 = por %p125, %p126
    %p128 = scmp.ne.s32.totalorder %s120, %s122
    %p129 = scmp.eq.s32.totalorder %s23, 1
    %p130 = por %p128, %p129
    %p131 = scmp.ne.s32.totalorder %s122, %s123
    %p132 = scmp.eq.s32.totalorder %s23, 0
    %p133 = por %p131, %p132
    %p134 = scmp.ne.s32.totalorder %s122, %s123
    %p135 = scmp.eq.s32.totalorder %s24, 1
    %p136 = por %p134, %p135
    %p138 = scmp.ne.s32.totalorder %s123, %s137
    %p139 = scmp.eq.s32.totalorder %s24, 0
    %p140 = por %p138, %p139
    %s142 = sadd.s32 %s141, 1
    %p145 = scmp.eq.s32.totalorder %s18, 1
    %p146 = scmp.ne.s32.totalorder %s141, %s143
    %p147 = scmp.eq.s32.totalorder %s18, 0
    %p148 = por %p146, %p147
    %p149 = scmp.ne.s32.totalorder %s141, %s143
    %p150 = scmp.eq.s32.totalorder %s23, 1
    %p151 = por %p149, %p150
    %p152 = scmp.ne.s32.totalorder %s143, %s144
    %p153 = scmp.eq.s32.totalorder %s23, 0
    %p154 = por %p152, %p153
    %p155 = scmp.ne.s32.totalorder %s143, %s144
    %p156 = scmp.eq.s32.totalorder %s24, 1
    %p157 = por %p155, %p156
    %p159 = scmp.ne.s32.totalorder %s144, %s158
    %p160 = scmp.eq.s32.totalorder %s24, 0
    %p161 = por %p159, %p160
    %s163 = sadd.s32 %s162, 1
    %p166 = scmp.eq.s32.totalorder %s18, 1
    %p167 = scmp.ne.s32.totalorder %s162, %s164
    %p168 = scmp.eq.s32.totalorder %s18, 0
    %p169 = por %p167, %p168
    %p170 = scmp.ne.s32.totalorder %s162, %s164
    %p171 = scmp.eq.s32.totalorder %s23, 1
    %p172 = por %p170, %p171
    %p173 = scmp.ne.s32.totalorder %s164, %s165
    %p174 = scmp.eq.s32.totalorder %s23, 0
    %p175 = por %p173, %p174
    %p176 = scmp.ne.s32.totalorder %s164, %s165
    %p177 = scmp.eq.s32.totalorder %s24, 1
    %p178 = por %p176, %p177
    %p180 = scmp.ne.s32.totalorder %s165, %s179
    %p181 = scmp.eq.s32.totalorder %s24, 0
    %p182 = por %p180, %p181
    %s184 = sadd.s32 %s183, 1
    %p187 = scmp.eq.s32.totalorder %s18, 1
    %p188 = scmp.ne.s32.totalorder %s183, %s185
    %p189 = scmp.eq.s32.totalorder %s18, 0
    %p190 = por %p188, %p189
    %p191 = scmp.ne.s32.totalorder %s183, %s185
    %p192 = scmp.eq.s32.totalorder %s23, 1
    %p193 = por %p191, %p192
    %p194 = scmp.ne.s32.totalorder %s185, %s186
    %p195 = scmp.eq.s32.totalorder %s23, 0
    %p196 = por %p194, %p195
    %p197 = scmp.ne.s32.totalorder %s185, %s186
    %p198 = scmp.eq.s32.totalorder %s24, 1
    %p199 = por %p197, %p198
    %p201 = scmp.ne.s32.totalorder %s186, %s200
    %p202 = scmp.eq.s32.totalorder %s24, 0
    %p203 = por %p201, %p202
    %s205 = sadd.s32 %s204, 1
    %p208 = scmp.eq.s32.totalorder %s18, 1
    %p209 = scmp.ne.s32.totalorder %s204, %s206
    %p210 = scmp.eq.s32.totalorder %s18, 0
    %p211 = por %p209, %p210
    %p212 = scmp.ne.s32.totalorder %s204, %s206
    %p213 = scmp.eq.s32.totalorder %s23, 1
    %p214 = por %p212, %p213
    %p215 = scmp.ne.s32.totalorder %s206, %s207
    %p216 = scmp.eq.s32.totalorder %s23, 0
    %p217 = por %p215, %p216
    %p218 = scmp.ne.s32.totalorder %s206, %s207
    %p219 = scmp.eq.s32.totalorder %s24, 1
    %p220 = por %p218, %p219
    %p222 = scmp.ne.s32.totalorder %s207, %s221
    %p223 = scmp.eq.s32.totalorder %s24, 0
    %p224 = por %p222, %p223
    %s226 = sadd.s32 %s225, 1
    %p229 = scmp.eq.s32.totalorder %s18, 1
    %p230 = scmp.ne.s32.totalorder %s225, %s227
    %p231 = scmp.eq.s32.totalorder %s18, 0
    %p232 = por %p230, %p231
    %p233 = scmp.ne.s32.totalorder %s225, %s227
    %p234 = scmp.eq.s32.totalorder %s23, 1
    %p235 = por %p233, %p234
    %p236 = scmp.ne.s32.totalorder %s227, %s228
    %p237 = scmp.eq.s32.totalorder %s23, 0
    %p238 = por %p236, %p237
    %p239 = scmp.ne.s32.totalorder %s227, %s228
    %p240 = scmp.eq.s32.totalorder %s24, 1
    %p241 = por %p239, %p240
    %p243 = scmp.ne.s32.totalorder %s228, %s242
    %p244 = scmp.eq.s32.totalorder %s24, 0
    %p245 = por %p243, %p244
    %s246 = ssub.s32 %s18, %s25
    %p247 = scmp.eq.s32.totalorder %s246, 0
    %s249 = sadd.s32 %s248, 1
    %s250 = scalar_select %p247, %s248, %s249
    %p253 = pneg %p247
    %p254 = scmp.eq.s32.totalorder %s18, 1
    %p255 = por %p253, %p254
    %p256 = scmp.ne.s32.totalorder %s248, %s251
    %p257 = scmp.eq.s32.totalorder %s18, 0
    %p258 = por %p256, %p257
    %p259 = scmp.ne.s32.totalorder %s248, %s251
    %p260 = scmp.eq.s32.totalorder %s23, 1
    %p261 = por %p259, %p260
    %p262 = scmp.ne.s32.totalorder %s251, %s252
    %p263 = scmp.eq.s32.totalorder %s23, 0
    %p264 = por %p262, %p263
    %p265 = scmp.ne.s32.totalorder %s251, %s252
    %p266 = scmp.eq.s32.totalorder %s24, 1
    %p267 = por %p265, %p266
    %p269 = scmp.ne.s32.totalorder %s252, %s268
    %p270 = scmp.eq.s32.totalorder %s24, 0
    %p271 = por %p269, %p270
    %p272 = scmp.le.s32.totalorder 1, %s18
    %p273 = scmp.lt.s32.totalorder %s18, 3
    %p274 = pnand %p272, %p273
    %p275 = pneg %p274
    // Predicated region
    $region9: #{forward.1} parent=5 // pred_check
      _
    $region10: #{forward.1} parent=5 // pred_check_branch
      %277 = sbr.rel (%p274) target = $region12
    $region11: #{forward.1} parent=5 // pred_region
      %s278 = ssub.s32 %s18, 1
      // Predicated region
      $region13: #{forward.1} parent=11 // pred_check
        %p279 = pneg %p91
      $region14: #{forward.1} parent=11 // pred_check_branch
        %281 = sbr.rel (%p279) target = $region16
      $region15: #{forward.1} parent=11 // pred_region
        _
      $region16: #{forward.1} parent=11 // pred_fallthru
        _
      // Predicated region
      $region17: #{forward.1} parent=11 // pred_check
        %p282 = pneg %p112
      $region18: #{forward.1} parent=11 // pred_check_branch
        %284 = sbr.rel (%p282) target = $region20
      $region19: #{forward.1} parent=11 // pred_region
        _
      $region20: #{forward.1} parent=11 // pred_fallthru
        _
      // Predicated region
      $region21: #{forward.1} parent=11 // pred_check
        %p285 = pneg %p133
      $region22: #{forward.1} parent=11 // pred_check_branch
        %287 = sbr.rel (%p285) target = $region24
      $region23: #{forward.1} parent=11 // pred_region
        _
      $region24: #{forward.1} parent=11 // pred_fallthru
        _
      // Predicated region
      $region25: #{forward.1} parent=11 // pred_check
        %p288 = pneg %p154
      $region26: #{forward.1} parent=11 // pred_check_branch
        %290 = sbr.rel (%p288) target = $region28
      $region27: #{forward.1} parent=11 // pred_region
        _
      $region28: #{forward.1} parent=11 // pred_fallthru
        _
      // Predicated region
      $region29: #{forward.1} parent=11 // pred_check
        %p291 = pneg %p175
      $region30: #{forward.1} parent=11 // pred_check_branch
        %293 = sbr.rel (%p291) target = $region32
      $region31: #{forward.1} parent=11 // pred_region
        _
      $region32: #{forward.1} parent=11 // pred_fallthru
        _
      // Predicated region
      $region33: #{forward.1} parent=11 // pred_check
        %p294 = pneg %p196
      $region34: #{forward.1} parent=11 // pred_check_branch
        %296 = sbr.rel (%p294) target = $region36
      $region35: #{forward.1} parent=11 // pred_region
        _
      $region36: #{forward.1} parent=11 // pred_fallthru
        _
      // Predicated region
      $region37: #{forward.1} parent=11 // pred_check
        %p297 = pneg %p217
      $region38: #{forward.1} parent=11 // pred_check_branch
        %299 = sbr.rel (%p297) target = $region40
      $region39: #{forward.1} parent=11 // pred_region
        _
      $region40: #{forward.1} parent=11 // pred_fallthru
        _
      // Predicated region
      $region41: #{forward.1} parent=11 // pred_check
        %p300 = pneg %p238
      $region42: #{forward.1} parent=11 // pred_check_branch
        %302 = sbr.rel (%p300) target = $region44
      $region43: #{forward.1} parent=11 // pred_region
        _
      $region44: #{forward.1} parent=11 // pred_fallthru
        _
    $region12: #{forward.1} parent=5 // pred_fallthru
      _
    %p303 = scmp.lt.s32.totalorder %s18, 2
    // Predicated region
    $region45: #{forward.1} parent=5 // pred_check
      %p304 = pneg %p303
    $region46: #{forward.1} parent=5 // pred_check_branch
      %306 = sbr.rel (%p304) target = $region48
    $region47: #{forward.1} parent=5 // pred_region
      // Predicated region
      $region49: #{forward.1} parent=47 // pred_check
        %p307 = pneg %p38
      $region50: #{forward.1} parent=47 // pred_check_branch
        %309 = sbr.rel (%p307) target = $region52
      $region51: #{forward.1} parent=47 // pred_region
        %p310 = scmp.lt.s32.totalorder %s18, 1
        %s311 = scalar_select %p310, %s18, 1
        %s312 = smul.addr %s311, 8
        %s313 = scalar_lea.vmem %s0, %s312
      $region52: #{forward.1} parent=47 // pred_fallthru
        _
      // Predicated region
      $region53: #{forward.1} parent=47 // pred_check
        %p314 = pneg %p64
      $region54: #{forward.1} parent=47 // pred_check_branch
        %316 = sbr.rel (%p314) target = $region56
      $region55: #{forward.1} parent=47 // pred_region
        %p317 = scmp.lt.s32.totalorder %s18, 1
        %s318 = scalar_select %p317, %s18, 1
        %s319 = smul.addr %s318, 2
        %s320 = scalar_lea.vmem %s1, %s319
      $region56: #{forward.1} parent=47 // pred_fallthru
        _
    $region48: #{forward.1} parent=5 // pred_fallthru
      _
    %p321 = scmp.le.s32.totalorder 1, %s18
    %p322 = scmp.lt.s32.totalorder %s18, 3
    %p323 = pnand %p321, %p322
    %p324 = pneg %p323
    // Predicated region
    $region57: #{forward.1} parent=5 // pred_check
      _
    $region58: #{forward.1} parent=5 // pred_check_branch
      %326 = sbr.rel (%p323) target = $region60
    $region59: #{forward.1} parent=5 // pred_region
      %s327 = ssub.s32 %s18, 1
      %p328 = scmp.lt.s32.totalorder %s23, 1
      %s329 = scalar_select %p328, %s23, 1
      %s330 = smul.addr %s329, 8
      %s331 = scalar_lea.vmem %s0, %s330
      %p332 = pneg %p44
      %p333 = pneg %p41
      %p334 = scmp.lt.s32.totalorder %s23, 1
      %s335 = scalar_select %p334, %s23, 1
      %s336 = smul.addr %s335, 2
      %s337 = scalar_lea.vmem %s1, %s336
      %p338 = pneg %p70
      %p339 = pneg %p67
      %p340 = pneg %p91
      %p341 = pneg %p88
      %p342 = pneg %p112
      %p343 = pneg %p109
      %p344 = pneg %p133
      %p345 = pneg %p130
      %p346 = pneg %p154
      %p347 = pneg %p151
      %p348 = pneg %p175
      %p349 = pneg %p172
      %p350 = pneg %p196
      %p351 = pneg %p193
      %p352 = pneg %p217
      %p353 = pneg %p214
      %p354 = pneg %p238
      %p355 = pneg %p235
      %p356 = pneg %p264
      %p357 = pneg %p261
      %p358 = scmp.lt.s32.totalorder %s23, 1
      %s359 = scalar_select %p358, %s23, 1
      %s360 = smul.addr %s359, 4
      %s361 = scalar_lea.vmem %s10, %s360
      %p362 = scmp.lt.s32.totalorder %s23, 1
      %s363 = scalar_select %p362, %s23, 1
      %s364 = smul.addr %s363, 8
      %s365 = scalar_lea.vmem %s0, %s364
      %p366 = scmp.lt.s32.totalorder %s23, 1
      %s367 = scalar_select %p366, %s23, 1
      %s368 = smul.addr %s367, 2
      %s369 = scalar_lea.vmem %s1, %s368
      %p370 = scmp.lt.s32.totalorder %s23, 1
      %s371 = scalar_select %p370, %s23, 1
      %s372 = smul.addr %s371, 4
      %s373 = scalar_lea.vmem %s10, %s372
      %v375 = vld [vmem:[%s365] sm:$0xff]
      %v376 = vlaneseq
      %v377 = vshrl.u32 %v376, 7
      %vm378 = vcmp.gt.s32.totalorder %v377, 0
      %v379 = vsel %vm378, 1, 0
      %v380 = vcvt.s32.f32 %v379
      %vm381 = vcmp.lt.s32.totalorder %v377, 7
      %v382 = vsel %vm381, 1, 0
      %v383 = vcvt.s32.f32 %v382
      %v384 = vadd.f32 %v380, 1.0
      %v385 = vadd.f32 %v384, %v383
      %v386 = vrcp.pop %v385
      %v387 = vmul.f32 1.0, %v386
      %v388 = vld [vmem:[%s2] sm:$0xf]
      %v389 = vld [vmem:[%s2 + $0x4] sm:$0xf]
      %v390 = vld [vmem:[%s2 + $0x8] sm:$0xf]
      %v391 = vld [vmem:[%s2 + $0xc] sm:$0xf]
      %v392 = vpack.c.bf16 %v375, %v375
      %v397 = vunpack.c.l.b16 %v388
      %v398 = vunpack.c.l.b16 %v389
      %v399 = vunpack.c.l.b16 %v390
      %v400 = vunpack.c.l.b16 %v391
      %v401 = vpack.c.b16 %v398, %v397
      %v402 = vpack.c.b16 %v400, %v399
      %vm405 = vcmask 261120
      %v407 = vsel %vm405, %v392, 0
      %409 = vmatprep.subr.bf16.mxu0 0
      %410 = vmatpush1.bf16.msra.mxu0 %v401
      %411 = vmatprep.subr.bf16.mxu0 0
      %412 = vmatpush1.bf16.msra.mxu0 %v402
      %413 = vmatprep.subr.bf16.mxu0 0
      %414 = vmatpush1.bf16.msra.mxu0 0
      %415 = vmatprep.subr.bf16.mxu0 0
      %416 = vmatpush1.bf16.msra.mxu0 0
      %417 = vmatprep.subr.bf16.mxu0 0
      %418 = vmatpush1.bf16.msra.mxu0 0
      %419 = vmatprep.subr.bf16.mxu0 0
      %420 = vmatpush1.bf16.msra.mxu0 0
      %421 = vmatprep.subr.bf16.mxu0 0
      %422 = vmatpush1.bf16.msra.mxu0 0
      %423 = vmatprep.subr.bf16.mxu0 0
      %424 = vmatpush1.bf16.msra.mxu0 0
      %425 = vmatprep.subr.bf16.mxu0 0
      %426 = vmatpush1.bf16.msra.mxu0 0
      %427 = vmatprep.subr.bf16.mxu0 0
      %428 = vmatpush1.bf16.msra.mxu0 0
      %429 = vmatprep.subr.bf16.mxu0 0
      %430 = vmatpush1.bf16.msra.mxu0 0
      %431 = vmatprep.subr.bf16.mxu0 0
      %432 = vmatpush1.bf16.msra.mxu0 0
      %433 = vmatprep.subr.bf16.mxu0 0
      %434 = vmatpush1.bf16.msra.mxu0 0
      %435 = vmatprep.subr.bf16.mxu0 0
      %436 = vmatpush1.bf16.msra.mxu0 0
      %437 = vmatprep.subr.bf16.mxu0 0
      %438 = vmatpush1.bf16.msra.mxu0 0
      %439 = vmatprep.subr.bf16.mxu0 0
      %440 = vmatpush1.bf16.msra.mxu0 0
      %441 = vmatprep.mubr.bf16.mxu0 0
      %442 = vmatmul.mubr.bf16.gmra.mrb[0].mxu0 %v407
      %v443 = vpop.f32.mrb[0].mxu0
      %v444 = vadd.f32 0.0, %v443
      %v445 = vpop.f32.mrb[0].mxu0
      %v446 = vpop.f32.mrb[0].mxu0
      %v447 = vpop.f32.mrb[0].mxu0
      %448 = vdwg.mxu0
      %v449 = vrot.slane %v444, 7
      %v450 = vrot.slane %v444, 1
      %v451 = vmul.f32 %v449, %v380
      %v452 = vadd.f32 %v444, %v451
      %v453 = vmul.f32 %v450, %v383
      %v454 = vadd.f32 %v452, %v453
      %v455 = vmul.f32 %v454, %v387
      %v456 = vld [vmem:[%s3] sm:$0x1]
      %v458 = vlaneseq
      %v459 = vshrl.u32 %v458, 7
      %v460 = vsub.s32 0, %v459
      %v461 = vrot.slane %v456, %v460
      %v463 = vadd.f32 %v455, %v461
      %v464 = vmax.f32 %v463, 0.0
      %v465 = vld [vmem:[%s4] sm:$0xf]
      %v466 = vld [vmem:[%s4 + $0x4] sm:$0xf]
      %v467 = vld [vmem:[%s4 + $0x8] sm:$0xf]
      %v468 = vld [vmem:[%s4 + $0xc] sm:$0xf]
      %v469 = vld [vmem:[%s4 + $0x10] sm:$0xf]
      %v470 = vld [vmem:[%s4 + $0x14] sm:$0xf]
      %v471 = vld [vmem:[%s4 + $0x18] sm:$0xf]
      %v472 = vld [vmem:[%s4 + $0x1c] sm:$0xf]
      %v473 = vpack.c.bf16 %v464, %v464
      %v482 = vunpack.c.l.b16 %v465
      %v483 = vunpack.c.l.b16 %v466
      %v484 = vunpack.c.l.b16 %v467
      %v485 = vunpack.c.l.b16 %v468
      %v486 = vunpack.c.l.b16 %v469
      %v487 = vunpack.c.l.b16 %v470
      %v488 = vunpack.c.l.b16 %v471
      %v489 = vunpack.c.l.b16 %v472
      %v490 = vpack.c.b16 %v483, %v482
      %v491 = vpack.c.b16 %v485, %v484
      %v492 = vpack.c.b16 %v487, %v486
      %v493 = vpack.c.b16 %v489, %v488
      %vm498 = vcmask 523264
      %v500 = vsel %vm498, %v473, 0
      %502 = vmatprep.subr.bf16.mxu0 0
      %503 = vmatpush1.bf16.msra.mxu0 %v490
      %504 = vmatprep.subr.bf16.mxu0 0
      %505 = vmatpush1.bf16.msra.mxu0 %v491
      %506 = vmatprep.subr.bf16.mxu0 0
      %507 = vmatpush1.bf16.msra.mxu0 %v492
      %508 = vmatprep.subr.bf16.mxu0 0
      %509 = vmatpush1.bf16.msra.mxu0 %v493
      %510 = vmatprep.subr.bf16.mxu0 0
      %511 = vmatpush1.bf16.msra.mxu0 0
      %512 = vmatprep.subr.bf16.mxu0 0
      %513 = vmatpush1.bf16.msra.mxu0 0
      %514 = vmatprep.subr.bf16.mxu0 0
      %515 = vmatpush1.bf16.msra.mxu0 0
      %516 = vmatprep.subr.bf16.mxu0 0
      %517 = vmatpush1.bf16.msra.mxu0 0
      %518 = vmatprep.subr.bf16.mxu0 0
      %519 = vmatpush1.bf16.msra.mxu0 0
      %520 = vmatprep.subr.bf16.mxu0 0
      %521 = vmatpush1.bf16.msra.mxu0 0
      %522 = vmatprep.subr.bf16.mxu0 0
      %523 = vmatpush1.bf16.msra.mxu0 0
      %524 = vmatprep.subr.bf16.mxu0 0
      %525 = vmatpush1.bf16.msra.mxu0 0
      %526 = vmatprep.subr.bf16.mxu0 0
      %527 = vmatpush1.bf16.msra.mxu0 0
      %528 = vmatprep.subr.bf16.mxu0 0
      %529 = vmatpush1.bf16.msra.mxu0 0
      %530 = vmatprep.subr.bf16.mxu0 0
      %531 = vmatpush1.bf16.msra.mxu0 0
      %532 = vmatprep.subr.bf16.mxu0 0
      %533 = vmatpush1.bf16.msra.mxu0 0
      %534 = vmatprep.mubr.bf16.mxu0 0
      %535 = vmatmul.mubr.bf16.gmra.mrb[0].mxu0 %v500
      %v536 = vpop.f32.mrb[0].mxu0
      %v537 = vadd.f32 0.0, %v536
      %v538 = vpop.f32.mrb[0].mxu0
      %v539 = vpop.f32.mrb[0].mxu0
      %v540 = vpop.f32.mrb[0].mxu0
      %541 = vdwg.mxu0
      %v542 = vrot.slane %v537, 7
      %v543 = vrot.slane %v537, 1
      %v544 = vmul.f32 %v542, %v380
      %v545 = vadd.f32 %v537, %v544
      %v546 = vmul.f32 %v543, %v383
      %v547 = vadd.f32 %v545, %v546
      %v548 = vmul.f32 %v547, %v387
      %v549 = vld [vmem:[%s5] sm:$0x1]
      %v551 = vlaneseq
      %v552 = vshrl.u32 %v551, 7
      %v553 = vsub.s32 0, %v552
      %v554 = vrot.slane %v549, %v553
      %v556 = vadd.f32 %v548, %v554
      %v557 = vmax.f32 %v556, 0.0
      %v558 = vld [vmem:[%s6] sm:$0xf]
      %v559 = vld [vmem:[%s6 + $0x4] sm:$0xf]
      %v560 = vld [vmem:[%s6 + $0x8] sm:$0xf]
      %v561 = vld [vmem:[%s6 + $0xc] sm:$0xf]
      %v566 = vunpack.c.l.b16 %v558
      %v567 = vunpack.c.l.b16 %v559
      %v568 = vunpack.c.l.b16 %v560
      %v569 = vunpack.c.l.b16 %v561
      %v570 = vpack.c.b16 %v567, %v566
      %v571 = vpack.c.b16 %v569, %v568
      %574 = vmatprep.subr.bf16.mxu0 0
      %575 = vmatpush1.bf16.msra.mxu0 %v570
      %576 = vmatprep.subr.bf16.mxu0 0
      %577 = vmatpush1.bf16.msra.mxu0 %v571
      %578 = vmatprep.subr.bf16.mxu0 0
      %579 = vmatpush1.bf16.msra.mxu0 0
      %580 = vmatprep.subr.bf16.mxu0 0
      %581 = vmatpush1.bf16.msra.mxu0 0
      %582 = vmatprep.subr.bf16.mxu0 0
      %583 = vmatpush1.bf16.msra.mxu0 0
      %584 = vmatprep.subr.bf16.mxu0 0
      %585 = vmatpush1.bf16.msra.mxu0 0
      %586 = vmatprep.subr.bf16.mxu0 0
      %587 = vmatpush1.bf16.msra.mxu0 0
      %588 = vmatprep.subr.bf16.mxu0 0
      %589 = vmatpush1.bf16.msra.mxu0 0
      %590 = vmatprep.subr.bf16.mxu0 0
      %591 = vmatpush1.bf16.msra.mxu0 0
      %592 = vmatprep.subr.bf16.mxu0 0
      %593 = vmatpush1.bf16.msra.mxu0 0
      %594 = vmatprep.subr.bf16.mxu0 0
      %595 = vmatpush1.bf16.msra.mxu0 0
      %596 = vmatprep.subr.bf16.mxu0 0
      %597 = vmatpush1.bf16.msra.mxu0 0
      %598 = vmatprep.subr.bf16.mxu0 0
      %599 = vmatpush1.bf16.msra.mxu0 0
      %600 = vmatprep.subr.bf16.mxu0 0
      %601 = vmatpush1.bf16.msra.mxu0 0
      %602 = vmatprep.subr.bf16.mxu0 0
      %603 = vmatpush1.bf16.msra.mxu0 0
      %604 = vmatprep.subr.bf16.mxu0 0
      %605 = vmatpush1.bf16.msra.mxu0 0
      %606 = vmatprep.mubr.bf16.mxu0 0
      %607 = vmatmul.mubr.bf16.gmra.mrb[0].mxu0 %v407
      %v608 = vpop.f32.mrb[0].mxu0
      %v609 = vadd.f32 0.0, %v608
      %v610 = vpop.f32.mrb[0].mxu0
      %v611 = vpop.f32.mrb[0].mxu0
      %v612 = vpop.f32.mrb[0].mxu0
      %613 = vdwg.mxu0
      %v614 = vadd.f32 %v557, %v609
      %v615 = vld [vmem:[%s7] sm:$0x1]
      %v617 = vlaneseq
      %v618 = vshrl.u32 %v617, 7
      %v619 = vsub.s32 0, %v618
      %v620 = vrot.slane %v615, %v619
      %v622 = vadd.f32 %v614, %v620
      %v623 = vld [vmem:[%s369] sm:$0x3]
      %v624 = vpack.c.bf16 %v622, %v622
      %vm625 = vcmask 64512
      %v627 = vsel %vm625, %v623, 0
      %vm629 = vcmask 1043456
      %v631 = vsel %vm629, %v624, 0
      %633 = vmatprep.subr.bf16.mxu0 0
      %634 = vmatpush1.bf16.msra.mxu0 %v631
      %635 = vmatprep.subr.bf16.mxu0 0
      %636 = vmatpush1.bf16.msra.mxu0 0
      %637 = vmatprep.subr.bf16.mxu0 0
      %638 = vmatpush1.bf16.msra.mxu0 0
      %639 = vmatprep.subr.bf16.mxu0 0
      %640 = vmatpush1.bf16.msra.mxu0 0
      %641 = vmatprep.subr.bf16.mxu0 0
      %642 = vmatpush1.bf16.msra.mxu0 0
      %643 = vmatprep.subr.bf16.mxu0 0
      %644 = vmatpush1.bf16.msra.mxu0 0
      %645 = vmatprep.subr.bf16.mxu0 0
      %646 = vmatpush1.bf16.msra.mxu0 0
      %647 = vmatprep.subr.bf16.mxu0 0
      %648 = vmatpush1.bf16.msra.mxu0 0
      %649 = vmatprep.subr.bf16.mxu0 0
      %650 = vmatpush1.bf16.msra.mxu0 0
      %651 = vmatprep.subr.bf16.mxu0 0
      %652 = vmatpush1.bf16.msra.mxu0 0
      %653 = vmatprep.subr.bf16.mxu0 0
      %654 = vmatpush1.bf16.msra.mxu0 0
      %655 = vmatprep.subr.bf16.mxu0 0
      %656 = vmatpush1.bf16.msra.mxu0 0
      %657 = vmatprep.subr.bf16.mxu0 0
      %658 = vmatpush1.bf16.msra.mxu0 0
      %659 = vmatprep.subr.bf16.mxu0 0
      %660 = vmatpush1.bf16.msra.mxu0 0
      %661 = vmatprep.subr.bf16.mxu0 0
      %662 = vmatpush1.bf16.msra.mxu0 0
      %663 = vmatprep.subr.bf16.mxu0 0
      %664 = vmatpush1.bf16.msra.mxu0 0
      %665 = vmatprep.mubr.bf16.mxu0 0
      %666 = vmatmul.mubr.bf16.gmra.mrb[0].mxu0 %v627
      %v667 = vpop.f32.mrb[0].mxu0
      %v668 = vadd.f32 0.0, %v667
      %v669 = vpop.f32.mrb[0].mxu0
      %v670 = vpop.f32.mrb[0].mxu0
      %v671 = vpop.f32.mrb[0].mxu0
      %672 = vdwg.mxu0
      %v673 = vld [vmem:[%s8] sm:$0x1]
      %v675 = vlaneseq
      %v676 = vshrl.u32 %v675, 7
      %v677 = vsub.s32 0, %v676
      %v678 = vrot.slane %v673, %v677
      %v680 = vmul.f32 %v668, %v678
      %vm681 = vcmask 124928
      %v682 = vsel %vm681, %v680, 0.0
      %683 = vadd.xlane.f32.xlu0 %v682
      %v684 = vpop.xlane.xlu0 %683
      %v685 = vld [vmem:[#allocation2] sm:$0x1]
      %v687 = vlaneseq
      %v688 = vshrl.u32 %v687, 7
      %v689 = vsub.s32 0, %v688
      %v690 = vrot.slane %v685, %v689
      %v692 = vadd.f32 %v684, %v690
      %vm693 = vcmask 2048
      %694 = vst.msk [vmem:[%s373] sm:$0x7] %vm693, %v692
      %p695 = scmp.lt.s32.totalorder %s23, 1
      %s696 = scalar_select %p695, %s23, 1
      %s697 = smul.addr %s696, 4
      %s698 = scalar_lea.vmem %s10, %s697
      // Predicated region
      $region61: #{forward.1} parent=59 // pred_check
        %p699 = pneg %p261
      $region62: #{forward.1} parent=59 // pred_check_branch
        %701 = sbr.rel (%p699) target = $region64
      $region63: #{forward.1} parent=59 // pred_region
        _
      $region64: #{forward.1} parent=59 // pred_fallthru
        _
    $region60: #{forward.1} parent=5 // pred_fallthru
      _
    %p702 = scmp.le.s32.totalorder 2, %s18
    // Predicated region
    $region65: #{forward.1} parent=5 // pred_check
      %p703 = pneg %p702
    $region66: #{forward.1} parent=5 // pred_check_branch
      %705 = sbr.rel (%p703) target = $region68
    $region67: #{forward.1} parent=5 // pred_region
      %s706 = ssub.s32 %s18, 2
      // Predicated region
      $region69: #{forward.1} parent=67 // pred_check
        %p707 = pneg %p267
      $region70: #{forward.1} parent=67 // pred_check_branch
        %709 = sbr.rel (%p707) target = $region72
      $region71: #{forward.1} parent=67 // pred_region
        %p710 = scmp.lt.s32.totalorder %s24, 1
        %s711 = scalar_select %p710, %s24, 1
        %s712 = smul.addr %s711, 4
        %s713 = scalar_lea.vmem %s10, %s712
      $region72: #{forward.1} parent=67 // pred_fallthru
        _
    $region68: #{forward.1} parent=5 // pred_fallthru
      _
  $region6: #{forward.1} parent=0 // loop_footer
    %s22 = sadd.s32 1, %s18
  $region7: #{forward.1} parent=0 // loop_footer_branch
    %17 = sbr.rel target = $region3
  $region8: #{forward.1} parent=0 // loop_exit
    _

</llo_original>
